<compile_context>
chip_gen: v7x
topology: tpu7x:2x2x1
jax: 0.10.0
libtpu: 0.0.40
codegen_flags: <defaults>
</compile_context>

<pallas_src>
import functools

import numpy as np
import jax
import jax.numpy as jnp
from jax.experimental import pallas as pl
from jax.experimental.pallas import tpu as pltpu


def _fused_graphsage_kernel(x_ref, const_ref, *args, W, num_layers):
    """One batch image per grid step; all layers fused, hidden stays in VMEM.

    x_ref:     (1, C_in, N)   node features, channels on sublanes, N=H*W on lanes
    const_ref: (5, N)         rows = [m_up, m_down, m_left, m_right, 1/degree]
    args:      w_cat_0, b_0, ..., w_cat_{L-1}, b_{L-1}, o_ref
               w_cat_i: (Cout_i, 2*Cin_i) = [W_l | W_r] ;  b_i: (Cout_i, 1)
    o_ref:     (1, Cout_last, N)
    """
    o_ref = args[-1]
    wb_refs = args[:-1]

    consts = const_ref[...]                       # (5, N) f32, hoisted constant
    m_up, m_down = consts[0:1, :], consts[1:2, :]
    m_left, m_right = consts[2:3, :], consts[3:4, :]
    inv_deg = consts[4:5, :]                      # exact 1/deg, deg in {2,3,4}

    h = x_ref[0].astype(jnp.float32)              # (C_in, N)
    n = h.shape[-1]

    def neighbour_mean(v):
        # Rolls along the lane (node) axis; lanes that wrapped around the image
        # boundary are zeroed by the masks (np.roll semantics: out[k] = v[k-s]).
        nb = pltpu.roll(v, W, axis=1) * m_up          # neighbour k - W  (i-1, j)
        nb += pltpu.roll(v, n - W, axis=1) * m_down   # neighbour k + W  (i+1, j)
        nb += pltpu.roll(v, 1, axis=1) * m_left       # neighbour k - 1  (i, j-1)
        nb += pltpu.roll(v, n - 1, axis=1) * m_right  # neighbour k + 1  (i, j+1)
        return nb * inv_deg                           # mean over existing nbrs

    for li in range(num_layers):
        w = wb_refs[2 * li][...].astype(jnp.float32)       # (Cout, 2*Cin)
        b = wb_refs[2 * li + 1][...].astype(jnp.float32)   # (Cout, 1)
        cin = h.shape[0]
        agg = neighbour_mean(h)
        if cin % 8 == 0:
            # Fused MXU matmul: [W_l | W_r] @ [agg ; h]  (K = 2*Cin)
            rhs = jnp.concatenate([agg, h], axis=0)        # (2*Cin, N)
            out = jnp.dot(w, rhs, preferred_element_type=jnp.float32)
        else:
            # Unaligned Cin (first layer, Cin=3): two small matmuls instead of
            # an unaligned sublane concat.
            out = (jnp.dot(w[:, :cin], agg, preferred_element_type=jnp.float32)
                   + jnp.dot(w[:, cin:], h, preferred_element_type=jnp.float32))
        out = out + b
        if li < num_layers - 1:
            h = jnp.maximum(out, 0.0)      # ReLU (dropout = inference identity)
        else:
            h = jax.nn.sigmoid(out)

    o_ref[0] = h.astype(o_ref.dtype)       # (Cout_last, N): lane-dense store


def _grid_constants(H, W):
    """(5, H*W) f32 table: 4 boundary masks + exact inverse neighbour count."""
    row = np.arange(H * W) // W
    col = np.arange(H * W) % W
    m_up = (row > 0).astype(np.float32)
    m_down = (row < H - 1).astype(np.float32)
    m_left = (col > 0).astype(np.float32)
    m_right = (col < W - 1).astype(np.float32)
    inv_deg = 1.0 / (m_up + m_down + m_left + m_right)     # degree in {2, 3, 4}
    return jnp.asarray(
        np.stack([m_up, m_down, m_left, m_right, inv_deg]).astype(np.float32))


def init_params(key, in_channels=3, out_channels=1, hidden_channels=64,
                num_layers=2):
    """generation_init_weights: Linear weights ~ N(0, 0.02), biases = 0.
    Weight layout matches PyTorch: lin_l.weight / lin_r.weight are (Cout, Cin)."""
    dims = [in_channels] + [hidden_channels] * (num_layers - 1) + [out_channels]
    params = []
    for li in range(num_layers):
        cin, cout = dims[li], dims[li + 1]
        key, k_l, k_r = jax.random.split(key, 3)
        wl = 0.02 * jax.random.normal(k_l, (cout, cin), jnp.float32)   # lin_l.weight
        wr = 0.02 * jax.random.normal(k_r, (cout, cin), jnp.float32)   # lin_r.weight
        bias = jnp.zeros((cout,), jnp.float32)                         # lin_l.bias
        params.append((wl, wr, bias))
    return params


@jax.jit
def graphsage_congestion_forward(x_nchw, params):
    """Matches GraphSAGECongestion.forward: (B, C, H, W) -> (B, out_c, H, W)."""
    B, C, H, W = x_nchw.shape
    N = H * W
    num_layers = len(params)

    x_cn = x_nchw.reshape(B, C, N)          # NCHW -> (B, C, H*W): free reshape
    const = _grid_constants(H, W)           # (5, N) hoisted stencil constants

    inputs = [x_cn, const]
    in_specs = [
        pl.BlockSpec((1, C, N), lambda b: (b, 0, 0)),
        pl.BlockSpec((5, N), lambda b: (0, 0)),
    ]
    for (wl, wr, bias) in params:
        cout, cin = wl.shape
        inputs.append(jnp.concatenate([wl, wr], axis=1))   # (Cout, 2*Cin)
        inputs.append(bias.reshape(cout, 1))               # (Cout, 1)
        in_specs.append(pl.BlockSpec((cout, 2 * cin), lambda b: (0, 0)))
        in_specs.append(pl.BlockSpec((cout, 1), lambda b: (0, 0)))

    cout_last = params[-1][0].shape[0]
    kernel = functools.partial(_fused_graphsage_kernel, W=W,
                               num_layers=num_layers)

    out = pl.pallas_call(
        kernel,
        out_shape=jax.ShapeDtypeStruct((B, cout_last, N), jnp.float32),
        grid=(B,),
        in_specs=in_specs,
        out_specs=pl.BlockSpec((1, cout_last, N), lambda b: (b, 0, 0)),
        compiler_params=pltpu.CompilerParams(
            dimension_semantics=("parallel",)),
    )(*inputs)

    return out.reshape(B, cout_last, H, W)   # free reshape back to NCHW


def _reference_forward(x_nchw, params):
    """Pure-JAX reference (pad-based stencil, unfused matmuls)."""
    B, C, H, W = x_nchw.shape
    x = jnp.transpose(x_nchw, (0, 2, 3, 1))                 # (B, H, W, C)
    ii = jnp.arange(H)[:, None]
    jj = jnp.arange(W)[None, :]
    deg = ((ii > 0).astype(jnp.float32) + (ii < H - 1).astype(jnp.float32)
           + (jj > 0).astype(jnp.float32) + (jj < W - 1).astype(jnp.float32))
    deg = deg[None, :, :, None]

    def neighbour_mean(g):
        zr = jnp.zeros_like(g[:, :1])
        zc = jnp.zeros_like(g[:, :, :1])
        up = jnp.concatenate([zr, g[:, :-1]], axis=1)        # value at (i-1, j)
        down = jnp.concatenate([g[:, 1:], zr], axis=1)       # value at (i+1, j)
        left = jnp.concatenate([zc, g[:, :, :-1]], axis=2)   # value at (i, j-1)
        right = jnp.concatenate([g[:, :, 1:], zc], axis=2)   # value at (i, j+1)
        return (up + down + left + right) / deg

    hp = jax.lax.Precision.HIGHEST
    n_layers = len(params)
    for i, (wl, wr, bias) in enumerate(params):
        out = (jnp.einsum("bhwc,oc->bhwo", neighbour_mean(x), wl, precision=hp)
               + jnp.einsum("bhwc,oc->bhwo", x, wr, precision=hp) + bias)
        x = jax.nn.relu(out) if i < n_layers - 1 else jax.nn.sigmoid(out)
    return jnp.transpose(x, (0, 3, 1, 2))


if __name__ == "__main__":
    key = jax.random.PRNGKey(0)
    k_x, k_p = jax.random.split(key)

    B, C, H, W = 2, 3, 16, 16
    x = jax.random.normal(k_x, (B, C, H, W), jnp.float32)

    params = init_params(k_p, in_channels=C, out_channels=1,
                         hidden_channels=64, num_layers=2)

    out = graphsage_congestion_forward(x, params)
    out = jax.block_until_ready(out)

    assert out.shape == (B, 1, H, W), out.shape
    assert bool(jnp.all(jnp.isfinite(out)))
    assert bool(jnp.all((out >= 0.0) & (out <= 1.0)))        # sigmoid output

    ref = _reference_forward(x, params)
    max_err = float(jnp.max(jnp.abs(out - ref)))
    assert max_err < 1e-4, f"mismatch vs pure-JAX reference: {max_err}"

    print("KERNEL_OK")
</pallas_src>

<mosaic_0001>
module attributes {stable_mosaic.version = 11 : i64} {
  func.func @_fused_graphsage_kernel(%arg0: i32, %arg1: memref<1x3x256xf32, #tpu.memory_space<vmem>>, %arg2: memref<5x256xf32, #tpu.memory_space<vmem>>, %arg3: memref<64x6xf32, #tpu.memory_space<vmem>>, %arg4: memref<64x1xf32, #tpu.memory_space<vmem>>, %arg5: memref<1x128xf32, #tpu.memory_space<vmem>>, %arg6: memref<1x1xf32, #tpu.memory_space<vmem>>, %arg7: memref<1x1x256xf32, #tpu.memory_space<vmem>>) attributes {dimension_semantics = [#tpu.dimension_semantics<parallel>], iteration_bounds = array<i64: 2>, scalar_prefetch = 0 : i64, scratch_operands = 0 : i64, tpu.core_type = #tpu.core_type<tc>, window_params = [{transform_indices = @transform_0, window_bounds = array<i64: 1, 3, 256>}, {pipeline_mode = #tpu.pipeline_mode<synchronous>, transform_indices = @transform_1, window_bounds = array<i64: 5, 256>}, {pipeline_mode = #tpu.pipeline_mode<synchronous>, transform_indices = @transform_2, window_bounds = array<i64: 64, 6>}, {pipeline_mode = #tpu.pipeline_mode<synchronous>, transform_indices = @transform_3, window_bounds = array<i64: 64, 1>}, {pipeline_mode = #tpu.pipeline_mode<synchronous>, transform_indices = @transform_4, window_bounds = array<i64: 1, 128>}, {pipeline_mode = #tpu.pipeline_mode<synchronous>, transform_indices = @transform_5, window_bounds = array<i64: 1, 1>}, {transform_indices = @transform_6, window_bounds = array<i64: 1, 1, 256>}]} {
    %c0 = arith.constant 0 : index
    %c0_0 = arith.constant 0 : index
    %0 = vector.load %arg2[%c0, %c0_0] : memref<5x256xf32, #tpu.memory_space<vmem>>, vector<5x256xf32>
    %1 = vector.extract_strided_slice %0 {offsets = [0, 0], sizes = [1, 256], strides = [1, 1]} : vector<5x256xf32> to vector<1x256xf32>
    %2 = vector.extract_strided_slice %0 {offsets = [1, 0], sizes = [1, 256], strides = [1, 1]} : vector<5x256xf32> to vector<1x256xf32>
    %3 = vector.extract_strided_slice %0 {offsets = [2, 0], sizes = [1, 256], strides = [1, 1]} : vector<5x256xf32> to vector<1x256xf32>
    %4 = vector.extract_strided_slice %0 {offsets = [3, 0], sizes = [1, 256], strides = [1, 1]} : vector<5x256xf32> to vector<1x256xf32>
    %5 = vector.extract_strided_slice %0 {offsets = [4, 0], sizes = [1, 256], strides = [1, 1]} : vector<5x256xf32> to vector<1x256xf32>
    %c0_1 = arith.constant 0 : index
    %c0_2 = arith.constant 0 : index
    %c0_3 = arith.constant 0 : index
    %6 = vector.load %arg1[%c0_1, %c0_2, %c0_3] : memref<1x3x256xf32, #tpu.memory_space<vmem>>, vector<1x3x256xf32>
    %7 = vector.shape_cast %6 : vector<1x3x256xf32> to vector<3x256xf32>
    %c0_4 = arith.constant 0 : index
    %c0_5 = arith.constant 0 : index
    %8 = vector.load %arg3[%c0_4, %c0_5] : memref<64x6xf32, #tpu.memory_space<vmem>>, vector<64x6xf32>
    %c0_6 = arith.constant 0 : index
    %c0_7 = arith.constant 0 : index
    %9 = vector.load %arg4[%c0_6, %c0_7] : memref<64x1xf32, #tpu.memory_space<vmem>>, vector<64x1xf32>
    %c16_i32 = arith.constant 16 : i32
    %10 = tpu.dynamic_rotate %7 by %c16_i32 dim 1 : vector<3x256xf32>, i32 -> vector<3x256xf32>
    %11 = vector.broadcast %1 : vector<1x256xf32> to vector<3x256xf32>
    %12 = arith.mulf %10, %11 : vector<3x256xf32>
    %c240_i32 = arith.constant 240 : i32
    %13 = tpu.dynamic_rotate %7 by %c240_i32 dim 1 : vector<3x256xf32>, i32 -> vector<3x256xf32>
    %14 = vector.broadcast %2 : vector<1x256xf32> to vector<3x256xf32>
    %15 = arith.mulf %13, %14 : vector<3x256xf32>
    %16 = arith.addf %12, %15 : vector<3x256xf32>
    %c1_i32 = arith.constant 1 : i32
    %17 = tpu.dynamic_rotate %7 by %c1_i32 dim 1 : vector<3x256xf32>, i32 -> vector<3x256xf32>
    %18 = vector.broadcast %3 : vector<1x256xf32> to vector<3x256xf32>
    %19 = arith.mulf %17, %18 : vector<3x256xf32>
    %20 = arith.addf %16, %19 : vector<3x256xf32>
    %c255_i32 = arith.constant 255 : i32
    %21 = tpu.dynamic_rotate %7 by %c255_i32 dim 1 : vector<3x256xf32>, i32 -> vector<3x256xf32>
    %22 = vector.broadcast %4 : vector<1x256xf32> to vector<3x256xf32>
    %23 = arith.mulf %21, %22 : vector<3x256xf32>
    %24 = arith.addf %20, %23 : vector<3x256xf32>
    %25 = vector.broadcast %5 : vector<1x256xf32> to vector<3x256xf32>
    %26 = arith.mulf %24, %25 : vector<3x256xf32>
    %27 = vector.extract_strided_slice %8 {offsets = [0, 0], sizes = [64, 3], strides = [1, 1]} : vector<64x6xf32> to vector<64x3xf32>
    %cst = arith.constant dense<0.000000e+00> : vector<64x256xf32>
    %28 = tpu.matmul %27, %26, %cst {dimension_numbers = #tpu.dot_dimension_numbers<[1], [0], [0], [1], [0, 0, 1, 1], [], []>} : vector<64x3xf32>, vector<3x256xf32>, vector<64x256xf32> -> vector<64x256xf32>
    %29 = vector.extract_strided_slice %8 {offsets = [0, 3], sizes = [64, 3], strides = [1, 1]} : vector<64x6xf32> to vector<64x3xf32>
    %cst_8 = arith.constant dense<0.000000e+00> : vector<64x256xf32>
    %30 = tpu.matmul %29, %7, %cst_8 {dimension_numbers = #tpu.dot_dimension_numbers<[1], [0], [0], [1], [0, 0, 1, 1], [], []>} : vector<64x3xf32>, vector<3x256xf32>, vector<64x256xf32> -> vector<64x256xf32>
    %31 = arith.addf %28, %30 : vector<64x256xf32>
    %32 = vector.broadcast %9 : vector<64x1xf32> to vector<64x256xf32>
    %33 = arith.addf %31, %32 : vector<64x256xf32>
    %cst_9 = arith.constant 0.000000e+00 : f32
    %34 = vector.broadcast %cst_9 : f32 to vector<64x256xf32>
    %35 = arith.maximumf %33, %34 : vector<64x256xf32>
    %c0_10 = arith.constant 0 : index
    %c0_11 = arith.constant 0 : index
    %36 = vector.load %arg5[%c0_10, %c0_11] : memref<1x128xf32, #tpu.memory_space<vmem>>, vector<1x128xf32>
    %c0_12 = arith.constant 0 : index
    %c0_13 = arith.constant 0 : index
    %37 = vector.load %arg6[%c0_12, %c0_13] : memref<1x1xf32, #tpu.memory_space<vmem>>, vector<1x1xf32>
    %c16_i32_14 = arith.constant 16 : i32
    %38 = tpu.dynamic_rotate %35 by %c16_i32_14 dim 1 : vector<64x256xf32>, i32 -> vector<64x256xf32>
    %39 = vector.broadcast %1 : vector<1x256xf32> to vector<64x256xf32>
    %40 = arith.mulf %38, %39 : vector<64x256xf32>
    %c240_i32_15 = arith.constant 240 : i32
    %41 = tpu.dynamic_rotate %35 by %c240_i32_15 dim 1 : vector<64x256xf32>, i32 -> vector<64x256xf32>
    %42 = vector.broadcast %2 : vector<1x256xf32> to vector<64x256xf32>
    %43 = arith.mulf %41, %42 : vector<64x256xf32>
    %44 = arith.addf %40, %43 : vector<64x256xf32>
    %c1_i32_16 = arith.constant 1 : i32
    %45 = tpu.dynamic_rotate %35 by %c1_i32_16 dim 1 : vector<64x256xf32>, i32 -> vector<64x256xf32>
    %46 = vector.broadcast %3 : vector<1x256xf32> to vector<64x256xf32>
    %47 = arith.mulf %45, %46 : vector<64x256xf32>
    %48 = arith.addf %44, %47 : vector<64x256xf32>
    %c255_i32_17 = arith.constant 255 : i32
    %49 = tpu.dynamic_rotate %35 by %c255_i32_17 dim 1 : vector<64x256xf32>, i32 -> vector<64x256xf32>
    %50 = vector.broadcast %4 : vector<1x256xf32> to vector<64x256xf32>
    %51 = arith.mulf %49, %50 : vector<64x256xf32>
    %52 = arith.addf %48, %51 : vector<64x256xf32>
    %53 = vector.broadcast %5 : vector<1x256xf32> to vector<64x256xf32>
    %54 = arith.mulf %52, %53 : vector<64x256xf32>
    %55 = tpu.concatenate %54, %35 in 0 : vector<64x256xf32>, vector<64x256xf32> -> vector<128x256xf32>
    %cst_18 = arith.constant dense<0.000000e+00> : vector<1x256xf32>
    %56 = tpu.matmul %36, %55, %cst_18 {dimension_numbers = #tpu.dot_dimension_numbers<[1], [0], [0], [1], [0, 0, 1, 1], [], []>} : vector<1x128xf32>, vector<128x256xf32>, vector<1x256xf32> -> vector<1x256xf32>
    %57 = vector.broadcast %37 : vector<1x1xf32> to vector<1x256xf32>
    %58 = arith.addf %56, %57 : vector<1x256xf32>
    %59 = arith.negf %58 : vector<1x256xf32>
    %60 = math.exp %59 : vector<1x256xf32>
    %cst_19 = arith.constant 1.000000e+00 : f32
    %61 = vector.broadcast %cst_19 : f32 to vector<1x256xf32>
    %62 = arith.addf %61, %60 : vector<1x256xf32>
    %63 = arith.divf %61, %62 : vector<1x256xf32>
    %c0_20 = arith.constant 0 : index
    %c0_21 = arith.constant 0 : index
    %c0_22 = arith.constant 0 : index
    %64 = vector.load %arg7[%c0_20, %c0_21, %c0_22] : memref<1x1x256xf32, #tpu.memory_space<vmem>>, vector<1x1x256xf32>
    %65 = vector.shape_cast %64 : vector<1x1x256xf32> to vector<1x256xf32>
    %66 = vector.shape_cast %63 : vector<1x256xf32> to vector<1x1x256xf32>
    tpu.vector_store %arg7[%c0_20, %c0_21, %c0_22], %66 {strides = array<i32>} : memref<1x1x256xf32, #tpu.memory_space<vmem>>, vector<1x1x256xf32>,
    return
  }
  func.func @transform_0(%arg0: i32) -> (i32, i32, i32) {
    %c0_i32 = arith.constant 0 : i32
    %c0_i32_0 = arith.constant 0 : i32
    %c0_i32_1 = arith.constant 0 : i32
    return %arg0, %c0_i32, %c0_i32_0 : i32, i32, i32
  }
  func.func @transform_1(%arg0: i32) -> (i32, i32) {
    %c0_i32 = arith.constant 0 : i32
    %c0_i32_0 = arith.constant 0 : i32
    %c0_i32_1 = arith.constant 0 : i32
    return %c0_i32, %c0_i32_0 : i32, i32
  }
  func.func @transform_2(%arg0: i32) -> (i32, i32) {
    %c0_i32 = arith.constant 0 : i32
    %c0_i32_0 = arith.constant 0 : i32
    %c0_i32_1 = arith.constant 0 : i32
    return %c0_i32, %c0_i32_0 : i32, i32
  }
  func.func @transform_3(%arg0: i32) -> (i32, i32) {
    %c0_i32 = arith.constant 0 : i32
    %c0_i32_0 = arith.constant 0 : i32
    %c0_i32_1 = arith.constant 0 : i32
    return %c0_i32, %c0_i32_0 : i32, i32
  }
  func.func @transform_4(%arg0: i32) -> (i32, i32) {
    %c0_i32 = arith.constant 0 : i32
    %c0_i32_0 = arith.constant 0 : i32
    %c0_i32_1 = arith.constant 0 : i32
    return %c0_i32, %c0_i32_0 : i32, i32
  }
  func.func @transform_5(%arg0: i32) -> (i32, i32) {
    %c0_i32 = arith.constant 0 : i32
    %c0_i32_0 = arith.constant 0 : i32
    %c0_i32_1 = arith.constant 0 : i32
    return %c0_i32, %c0_i32_0 : i32, i32
  }
  func.func @transform_6(%arg0: i32) -> (i32, i32, i32) {
    %c0_i32 = arith.constant 0 : i32
    %c0_i32_0 = arith.constant 0 : i32
    %c0_i32_1 = arith.constant 0 : i32
    return %arg0, %c0_i32, %c0_i32_0 : i32, i32, i32
  }
}

</mosaic_0001>

<llo_original>
// kernel: graphsage_congestion_forward.1
$region0: #{graphsage_congestion_forward.1}
  #allocation0 [shape = 'u32[]', space=smem, size = 0x4, offset = 0x4, fixed_abs, tag = 'smem constant byte address 0x4 - core index']
  #allocation1 [shape = 'u32[144,128]{1,0:T(1,128)}', space=vmem, size = 0x12000, scoped, tag = 'internal scratch']
  #allocation2 [shape = 'f32[1,1]{1,0:T(1,128)S(1)}', space=vmem, size = 0x200, scoped, tag = 'scoped memory for graphsage_congestion_forward.1']
  %s0 = inlined_call_operand.vmem [shape: f32[2,3,256], index: 0, kind: input, shape index: {}]
  %s1 = inlined_call_operand.vmem [shape: f32[5,256], index: 1, kind: input, shape index: {}]
  %s2 = inlined_call_operand.vmem [shape: f32[64,6], index: 2, kind: input, shape index: {}]
  %s3 = inlined_call_operand.vmem [shape: f32[64,1], index: 3, kind: input, shape index: {}]
  %s4 = inlined_call_operand.vmem [shape: f32[1,128], index: 4, kind: input, shape index: {}]
  %s5 = inlined_call_operand.<no memory space> [shape: f32[1,1], index: 5, kind: input, shape index: {}]
  %s6 = inlined_call_operand.vmem [shape: f32[2,1,256], index: 6, kind: output, shape index: {}]
  %s7 = sld [smem:[#allocation0]]
  $region57: #{graphsage_congestion_forward.1} parent=0
    _
  %s9 = ssub.s32 1, %s7
  %s10 = scalar_select 0, %s9, %s7
  %v11 = vstv %s5
  %12 = vst [vmem:[#allocation2] sm:$0x1] %v11
  loop: start=0, step=1, limit=4
  $region2: #{graphsage_congestion_forward.1} parent=0 // loop_pre_header
    _
  $region3: #{graphsage_congestion_forward.1} parent=0 // loop_header
    %s14 = sphi 0, %s18
    %p15 = scmp.ge.s32.totalorder %s14, 4
    %s24 = sphi 0, %s26
    %s27 = sphi 0, %s24
    %s28 = sphi 0, %s27
    %s44 = sphi 0, %s28
    %s48 = sphi 0, %s48
    %s50 = sphi 0, %s48
    %s51 = sphi 0, %s50
    %s65 = sphi 0, %s51
    %s69 = sphi 0, %s69
    %s71 = sphi 0, %s69
    %s72 = sphi 0, %s71
    %s86 = sphi 0, %s72
    %s90 = sphi 0, %s90
    %s92 = sphi 0, %s90
    %s93 = sphi 0, %s92
    %s107 = sphi 0, %s93
    %s111 = sphi 0, %s111
    %s113 = sphi 0, %s111
    %s114 = sphi 0, %s113
    %s128 = sphi 0, %s114
    %s132 = sphi 0, %s132
    %s134 = sphi 0, %s132
    %s135 = sphi 0, %s134
    %s149 = sphi 0, %s135
    %s155 = sphi 0, %s157
    %s158 = sphi 0, %s155
    %s159 = sphi 0, %s158
    %s175 = sphi 0, %s159
  $region4: #{graphsage_congestion_forward.1} parent=0 // loop_header_branch
    %17 = sbr.rel (%p15) target = $region8
  $region5: #{graphsage_congestion_forward.1} parent=0 // loop_body
    %s19 = ssub.s32 %s14, 1
    %s20 = ssub.s32 %s14, 2
    %s21 = sadd.s32 %s14, 1
    %s22 = ssub.s32 %s14, %s21
    %p23 = scmp.eq.s32.totalorder %s22, 0
    %s25 = sadd.s32 %s24, 1
    %s26 = scalar_select %p23, %s24, %s25
    %p29 = pneg %p23
    %p30 = scmp.eq.s32.totalorder %s14, 1
    %p31 = por %p29, %p30
    %p32 = scmp.ne.s32.totalorder %s24, %s27
    %p33 = scmp.eq.s32.totalorder %s14, 0
    %p34 = por %p32, %p33
    %p35 = scmp.ne.s32.totalorder %s24, %s27
    %p36 = scmp.eq.s32.totalorder %s19, 1
    %p37 = por %p35, %p36
    %p38 = scmp.ne.s32.totalorder %s27, %s28
    %p39 = scmp.eq.s32.totalorder %s19, 0
    %p40 = por %p38, %p39
    %p41 = scmp.ne.s32.totalorder %s27, %s28
    %p42 = scmp.eq.s32.totalorder %s20, 1
    %p43 = por %p41, %p42
    %p45 = scmp.ne.s32.totalorder %s28, %s44
    %p46 = scmp.eq.s32.totalorder %s20, 0
    %p47 = por %p45, %p46
    %s49 = sadd.s32 %s48, 1
    %p52 = scmp.eq.s32.totalorder %s14, 1
    %p53 = scmp.ne.s32.totalorder %s48, %s50
    %p54 = scmp.eq.s32.totalorder %s14, 0
    %p55 = por %p53, %p54
    %p56 = scmp.ne.s32.totalorder %s48, %s50
    %p57 = scmp.eq.s32.totalorder %s19, 1
    %p58 = por %p56, %p57
    %p59 = scmp.ne.s32.totalorder %s50, %s51
    %p60 = scmp.eq.s32.totalorder %s19, 0
    %p61 = por %p59, %p60
    %p62 = scmp.ne.s32.totalorder %s50, %s51
    %p63 = scmp.eq.s32.totalorder %s20, 1
    %p64 = por %p62, %p63
    %p66 = scmp.ne.s32.totalorder %s51, %s65
    %p67 = scmp.eq.s32.totalorder %s20, 0
    %p68 = por %p66, %p67
    %s70 = sadd.s32 %s69, 1
    %p73 = scmp.eq.s32.totalorder %s14, 1
    %p74 = scmp.ne.s32.totalorder %s69, %s71
    %p75 = scmp.eq.s32.totalorder %s14, 0
    %p76 = por %p74, %p75
    %p77 = scmp.ne.s32.totalorder %s69, %s71
    %p78 = scmp.eq.s32.totalorder %s19, 1
    %p79 = por %p77, %p78
    %p80 = scmp.ne.s32.totalorder %s71, %s72
    %p81 = scmp.eq.s32.totalorder %s19, 0
    %p82 = por %p80, %p81
    %p83 = scmp.ne.s32.totalorder %s71, %s72
    %p84 = scmp.eq.s32.totalorder %s20, 1
    %p85 = por %p83, %p84
    %p87 = scmp.ne.s32.totalorder %s72, %s86
    %p88 = scmp.eq.s32.totalorder %s20, 0
    %p89 = por %p87, %p88
    %s91 = sadd.s32 %s90, 1
    %p94 = scmp.eq.s32.totalorder %s14, 1
    %p95 = scmp.ne.s32.totalorder %s90, %s92
    %p96 = scmp.eq.s32.totalorder %s14, 0
    %p97 = por %p95, %p96
    %p98 = scmp.ne.s32.totalorder %s90, %s92
    %p99 = scmp.eq.s32.totalorder %s19, 1
    %p100 = por %p98, %p99
    %p101 = scmp.ne.s32.totalorder %s92, %s93
    %p102 = scmp.eq.s32.totalorder %s19, 0
    %p103 = por %p101, %p102
    %p104 = scmp.ne.s32.totalorder %s92, %s93
    %p105 = scmp.eq.s32.totalorder %s20, 1
    %p106 = por %p104, %p105
    %p108 = scmp.ne.s32.totalorder %s93, %s107
    %p109 = scmp.eq.s32.totalorder %s20, 0
    %p110 = por %p108, %p109
    %s112 = sadd.s32 %s111, 1
    %p115 = scmp.eq.s32.totalorder %s14, 1
    %p116 = scmp.ne.s32.totalorder %s111, %s113
    %p117 = scmp.eq.s32.totalorder %s14, 0
    %p118 = por %p116, %p117
    %p119 = scmp.ne.s32.totalorder %s111, %s113
    %p120 = scmp.eq.s32.totalorder %s19, 1
    %p121 = por %p119, %p120
    %p122 = scmp.ne.s32.totalorder %s113, %s114
    %p123 = scmp.eq.s32.totalorder %s19, 0
    %p124 = por %p122, %p123
    %p125 = scmp.ne.s32.totalorder %s113, %s114
    %p126 = scmp.eq.s32.totalorder %s20, 1
    %p127 = por %p125, %p126
    %p129 = scmp.ne.s32.totalorder %s114, %s128
    %p130 = scmp.eq.s32.totalorder %s20, 0
    %p131 = por %p129, %p130
    %s133 = sadd.s32 %s132, 1
    %p136 = scmp.eq.s32.totalorder %s14, 1
    %p137 = scmp.ne.s32.totalorder %s132, %s134
    %p138 = scmp.eq.s32.totalorder %s14, 0
    %p139 = por %p137, %p138
    %p140 = scmp.ne.s32.totalorder %s132, %s134
    %p141 = scmp.eq.s32.totalorder %s19, 1
    %p142 = por %p140, %p141
    %p143 = scmp.ne.s32.totalorder %s134, %s135
    %p144 = scmp.eq.s32.totalorder %s19, 0
    %p145 = por %p143, %p144
    %p146 = scmp.ne.s32.totalorder %s134, %s135
    %p147 = scmp.eq.s32.totalorder %s20, 1
    %p148 = por %p146, %p147
    %p150 = scmp.ne.s32.totalorder %s135, %s149
    %p151 = scmp.eq.s32.totalorder %s20, 0
    %p152 = por %p150, %p151
    %s153 = ssub.s32 %s14, %s21
    %p154 = scmp.eq.s32.totalorder %s153, 0
    %s156 = sadd.s32 %s155, 1
    %s157 = scalar_select %p154, %s155, %s156
    %p160 = pneg %p154
    %p161 = scmp.eq.s32.totalorder %s14, 1
    %p162 = por %p160, %p161
    %p163 = scmp.ne.s32.totalorder %s155, %s158
    %p164 = scmp.eq.s32.totalorder %s14, 0
    %p165 = por %p163, %p164
    %p166 = scmp.ne.s32.totalorder %s155, %s158
    %p167 = scmp.eq.s32.totalorder %s19, 1
    %p168 = por %p166, %p167
    %p169 = scmp.ne.s32.totalorder %s158, %s159
    %p170 = scmp.eq.s32.totalorder %s19, 0
    %p171 = por %p169, %p170
    %p172 = scmp.ne.s32.totalorder %s158, %s159
    %p173 = scmp.eq.s32.totalorder %s20, 1
    %p174 = por %p172, %p173
    %p176 = scmp.ne.s32.totalorder %s159, %s175
    %p177 = scmp.eq.s32.totalorder %s20, 0
    %p178 = por %p176, %p177
    %p179 = scmp.le.s32.totalorder 1, %s14
    %p180 = scmp.lt.s32.totalorder %s14, 3
    %p181 = pnand %p179, %p180
    %p182 = pneg %p181
    // Predicated region
    $region9: #{graphsage_congestion_forward.1} parent=5 // pred_check
      _
    $region10: #{graphsage_congestion_forward.1} parent=5 // pred_check_branch
      %184 = sbr.rel (%p181) target = $region12
    $region11: #{graphsage_congestion_forward.1} parent=5 // pred_region
      %s185 = ssub.s32 %s14, 1
      // Predicated region
      $region13: #{graphsage_congestion_forward.1} parent=11 // pred_check
        %p186 = pneg %p61
      $region14: #{graphsage_congestion_forward.1} parent=11 // pred_check_branch
        %188 = sbr.rel (%p186) target = $region16
      $region15: #{graphsage_congestion_forward.1} parent=11 // pred_region
        _
      $region16: #{graphsage_congestion_forward.1} parent=11 // pred_fallthru
        _
      // Predicated region
      $region17: #{graphsage_congestion_forward.1} parent=11 // pred_check
        %p189 = pneg %p82
      $region18: #{graphsage_congestion_forward.1} parent=11 // pred_check_branch
        %191 = sbr.rel (%p189) target = $region20
      $region19: #{graphsage_congestion_forward.1} parent=11 // pred_region
        _
      $region20: #{graphsage_congestion_forward.1} parent=11 // pred_fallthru
        _
      // Predicated region
      $region21: #{graphsage_congestion_forward.1} parent=11 // pred_check
        %p192 = pneg %p103
      $region22: #{graphsage_congestion_forward.1} parent=11 // pred_check_branch
        %194 = sbr.rel (%p192) target = $region24
      $region23: #{graphsage_congestion_forward.1} parent=11 // pred_region
        _
      $region24: #{graphsage_congestion_forward.1} parent=11 // pred_fallthru
        _
      // Predicated region
      $region25: #{graphsage_congestion_forward.1} parent=11 // pred_check
        %p195 = pneg %p124
      $region26: #{graphsage_congestion_forward.1} parent=11 // pred_check_branch
        %197 = sbr.rel (%p195) target = $region28
      $region27: #{graphsage_congestion_forward.1} parent=11 // pred_region
        _
      $region28: #{graphsage_congestion_forward.1} parent=11 // pred_fallthru
        _
      // Predicated region
      $region29: #{graphsage_congestion_forward.1} parent=11 // pred_check
        %p198 = pneg %p145
      $region30: #{graphsage_congestion_forward.1} parent=11 // pred_check_branch
        %200 = sbr.rel (%p198) target = $region32
      $region31: #{graphsage_congestion_forward.1} parent=11 // pred_region
        _
      $region32: #{graphsage_congestion_forward.1} parent=11 // pred_fallthru
        _
    $region12: #{graphsage_congestion_forward.1} parent=5 // pred_fallthru
      _
    %p201 = scmp.lt.s32.totalorder %s14, 2
    // Predicated region
    $region33: #{graphsage_congestion_forward.1} parent=5 // pred_check
      %p202 = pneg %p201
    $region34: #{graphsage_congestion_forward.1} parent=5 // pred_check_branch
      %204 = sbr.rel (%p202) target = $region36
    $region35: #{graphsage_congestion_forward.1} parent=5 // pred_region
      // Predicated region
      $region37: #{graphsage_congestion_forward.1} parent=35 // pred_check
        %p205 = pneg %p34
      $region38: #{graphsage_congestion_forward.1} parent=35 // pred_check_branch
        %207 = sbr.rel (%p205) target = $region40
      $region39: #{graphsage_congestion_forward.1} parent=35 // pred_region
        %p208 = scmp.lt.s32.totalorder %s14, 1
        %s209 = scalar_select %p208, %s14, 1
        %s210 = smul.addr %s209, 2
        %s211 = smul.addr %s210, 4
        %s212 = scalar_lea.vmem %s0, %s211
      $region40: #{graphsage_congestion_forward.1} parent=35 // pred_fallthru
        _
    $region36: #{graphsage_congestion_forward.1} parent=5 // pred_fallthru
      _
    %p213 = scmp.le.s32.totalorder 1, %s14
    %p214 = scmp.lt.s32.totalorder %s14, 3
    %p215 = pnand %p213, %p214
    %p216 = pneg %p215
    // Predicated region
    $region41: #{graphsage_congestion_forward.1} parent=5 // pred_check
      _
    $region42: #{graphsage_congestion_forward.1} parent=5 // pred_check_branch
      %218 = sbr.rel (%p215) target = $region44
    $region43: #{graphsage_congestion_forward.1} parent=5 // pred_region
      %s219 = ssub.s32 %s14, 1
      %p220 = scmp.lt.s32.totalorder %s19, 1
      %s221 = scalar_select %p220, %s19, 1
      %s222 = smul.addr %s221, 2
      %s223 = smul.addr %s222, 4
      %s224 = scalar_lea.vmem %s0, %s223
      %p225 = pneg %p40
      %p226 = pneg %p37
      %p227 = pneg %p61
      %p228 = pneg %p58
      %p229 = pneg %p82
      %p230 = pneg %p79
      %p231 = pneg %p103
      %p232 = pneg %p100
      %p233 = pneg %p124
      %p234 = pneg %p121
      %p235 = pneg %p145
      %p236 = pneg %p142
      %p237 = pneg %p171
      %p238 = pneg %p168
      %p239 = scmp.lt.s32.totalorder %s19, 1
      %s240 = scalar_select %p239, %s19, 1
      %s241 = smul.addr %s240, 2
      %s242 = scalar_lea.vmem %s6, %s241
      %p243 = scmp.lt.s32.totalorder %s19, 1
      %s244 = scalar_select %p243, %s19, 1
      %s245 = smul.addr %s244, 2
      %s246 = smul.addr %s245, 4
      %s247 = scalar_lea.vmem %s0, %s246
      %p248 = scmp.lt.s32.totalorder %s19, 1
      %s249 = scalar_select %p248, %s19, 1
      %s250 = smul.addr %s249, 2
      %s251 = scalar_lea.vmem %s6, %s250
      %v252 = vld [vmem:[%s1] sm:$0x1f]
      %v253 = vld [vmem:[%s1 + $0x8] sm:$0x1f]
      %v254 = vld [vmem:[%s247] sm:$0x77]
      %v255 = vld [vmem:[%s2] sm:$0xff]
      %v256 = vld [vmem:[%s2 + $0x8] sm:$0xff]
      %v257 = vld [vmem:[%s2 + $0x10] sm:$0xff]
      %v258 = vld [vmem:[%s2 + $0x18] sm:$0xff]
      %v259 = vld [vmem:[%s2 + $0x20] sm:$0xff]
      %v260 = vld [vmem:[%s2 + $0x28] sm:$0xff]
      %v261 = vld [vmem:[%s2 + $0x30] sm:$0xff]
      %v262 = vld [vmem:[%s2 + $0x38] sm:$0xff]
      %v263 = vld [vmem:[%s3] sm:$0xff]
      %v264 = vld [vmem:[%s3 + $0x8] sm:$0xff]
      %v265 = vld [vmem:[%s3 + $0x10] sm:$0xff]
      %v266 = vld [vmem:[%s3 + $0x18] sm:$0xff]
      %v267 = vld [vmem:[%s3 + $0x20] sm:$0xff]
      %v268 = vld [vmem:[%s3 + $0x28] sm:$0xff]
      %v269 = vld [vmem:[%s3 + $0x30] sm:$0xff]
      %v270 = vld [vmem:[%s3 + $0x38] sm:$0xff]
      %v272 = vcombine.high %v254, %v254
      %274 = vrot.lane.b32.xlu0 %v254, 16
      %v275 = vpop.permute.xlu0 %274
      %276 = vrot.lane.b32.xlu0 %v272, 16
      %v277 = vpop.permute.xlu0 %276
      %v278 = vlaneseq
      %v279 = vand.u32 %v278, 127
      %vm280 = vcmp.lt.s32.totalorder %v279, 16
      %v281 = vsel %vm280, %v275, %v277
      %v282 = vsel %vm280, %v277, %v275
      %v283 = vlaneseq
      %v284 = vshrl.u32 %v283, 7
      %v285 = vsub.s32 0, %v284
      %v286 = vrot.slane %v252, %v285
      %v287 = vlaneseq
      %v288 = vshrl.u32 %v287, 7
      %v289 = vsub.s32 0, %v288
      %v290 = vrot.slane %v253, %v289
      %v291 = vmul.f32 %v282, %v286
      %v292 = vmul.f32 %v281, %v290
      %293 = vrot.lane.b32.xlu0 %v254, 112
      %v294 = vpop.permute.xlu0 %293
      %295 = vrot.lane.b32.xlu0 %v272, 112
      %v296 = vpop.permute.xlu0 %295
      %vm297 = vcmp.lt.s32.totalorder %v279, 112
      %v298 = vsel %vm297, %v294, %v296
      %v299 = vsel %vm297, %v296, %v294
      %v300 = vlaneseq
      %v301 = vshrl.u32 %v300, 7
      %v302 = vsub.s32 1, %v301
      %v303 = vrot.slane %v252, %v302
      %v304 = vlaneseq
      %v305 = vshrl.u32 %v304, 7
      %v306 = vsub.s32 1, %v305
      %v307 = vrot.slane %v253, %v306
      %v308 = vmul.f32 %v298, %v303
      %v309 = vmul.f32 %v299, %v307
      %v310 = vadd.f32 %v291, %v308
      %v311 = vadd.f32 %v292, %v309
      %312 = vrot.lane.b32.xlu0 %v254, 1
      %v313 = vpop.permute.xlu0 %312
      %314 = vrot.lane.b32.xlu0 %v272, 1
      %v315 = vpop.permute.xlu0 %314
      %vm316 = vcmp.lt.s32.totalorder %v279, 1
      %v317 = vsel %vm316, %v313, %v315
      %v318 = vsel %vm316, %v315, %v313
      %v319 = vlaneseq
      %v320 = vshrl.u32 %v319, 7
      %v321 = vsub.s32 2, %v320
      %v322 = vrot.slane %v252, %v321
      %v323 = vlaneseq
      %v324 = vshrl.u32 %v323, 7
      %v325 = vsub.s32 2, %v324
      %v326 = vrot.slane %v253, %v325
      %v327 = vmul.f32 %v318, %v322
      %v328 = vmul.f32 %v317, %v326
      %v329 = vadd.f32 %v310, %v327
      %v330 = vadd.f32 %v311, %v328
      %331 = vrot.lane.b32.xlu0 %v254, 127
      %v332 = vpop.permute.xlu0 %331
      %333 = vrot.lane.b32.xlu0 %v272, 127
      %v334 = vpop.permute.xlu0 %333
      %vm335 = vcmp.lt.s32.totalorder %v279, 127
      %v336 = vsel %vm335, %v332, %v334
      %v337 = vsel %vm335, %v334, %v332
      %v338 = vlaneseq
      %v339 = vshrl.u32 %v338, 7
      %v340 = vsub.s32 3, %v339
      %v341 = vrot.slane %v252, %v340
      %v342 = vlaneseq
      %v343 = vshrl.u32 %v342, 7
      %v344 = vsub.s32 3, %v343
      %v345 = vrot.slane %v253, %v344
      %v346 = vmul.f32 %v336, %v341
      %v347 = vmul.f32 %v337, %v345
      %v348 = vadd.f32 %v329, %v346
      %v349 = vadd.f32 %v330, %v347
      %v350 = vlaneseq
      %v351 = vshrl.u32 %v350, 7
      %v352 = vsub.s32 4, %v351
      %v353 = vrot.slane %v252, %v352
      %v354 = vlaneseq
      %v355 = vshrl.u32 %v354, 7
      %v356 = vsub.s32 4, %v355
      %v357 = vrot.slane %v253, %v356
      %v358 = vmul.f32 %v348, %v353
      %v359 = vmul.f32 %v349, %v357
      %368 = vrot.lane.b32.xlu0 %v255, 125
      %v369 = vpop.permute.xlu0 %368
      %370 = vrot.lane.b32.xlu0 %v256, 125
      %v371 = vpop.permute.xlu0 %370
      %372 = vrot.lane.b32.xlu0 %v257, 125
      %v373 = vpop.permute.xlu0 %372
      %374 = vrot.lane.b32.xlu0 %v258, 125
      %v375 = vpop.permute.xlu0 %374
      %376 = vrot.lane.b32.xlu0 %v259, 125
      %v377 = vpop.permute.xlu0 %376
      %378 = vrot.lane.b32.xlu0 %v260, 125
      %v379 = vpop.permute.xlu0 %378
      %380 = vrot.lane.b32.xlu0 %v261, 125
      %v381 = vpop.permute.xlu0 %380
      %382 = vrot.lane.b32.xlu0 %v262, 125
      %v383 = vpop.permute.xlu0 %382
      %vm384 = vcmask 23552
      %v385 = vsel %vm384, %v369, 0
      %v387 = vsel %vm384, %v371, 0
      %v389 = vsel %vm384, %v373, 0
      %v391 = vsel %vm384, %v375, 0
      %v393 = vsel %vm384, %v377, 0
      %v395 = vsel %vm384, %v379, 0
      %v397 = vsel %vm384, %v381, 0
      %v399 = vsel %vm384, %v383, 0
      %vm401 = vcmask 1042432
      %v402 = vsel %vm401, %v254, 0
      %v404 = vsel %vm401, %v272, 0
      %406 = vmatprep.subr.mxu0 %v404
      %407 = vmatpush1.msra.mxu0 %v402
      %408 = vmatprep.subr.mxu0 0.0
      %409 = vmatpush1.msra.mxu0 0.0
      %410 = vmatprep.subr.mxu0 0.0
      %411 = vmatpush1.msra.mxu0 0.0
      %412 = vmatprep.subr.mxu0 0.0
      %413 = vmatpush1.msra.mxu0 0.0
      %414 = vmatprep.subr.mxu0 0.0
      %415 = vmatpush1.msra.mxu0 0.0
      %416 = vmatprep.subr.mxu0 0.0
      %417 = vmatpush1.msra.mxu0 0.0
      %418 = vmatprep.subr.mxu0 0.0
      %419 = vmatpush1.msra.mxu0 0.0
      %420 = vmatprep.subr.mxu0 0.0
      %421 = vmatpush1.msra.mxu0 0.0
      %422 = vmatprep.subr.mxu0 0.0
      %423 = vmatpush1.msra.mxu0 0.0
      %424 = vmatprep.subr.mxu0 0.0
      %425 = vmatpush1.msra.mxu0 0.0
      %426 = vmatprep.subr.mxu0 0.0
      %427 = vmatpush1.msra.mxu0 0.0
      %428 = vmatprep.subr.mxu0 0.0
      %429 = vmatpush1.msra.mxu0 0.0
      %430 = vmatprep.subr.mxu0 0.0
      %431 = vmatpush1.msra.mxu0 0.0
      %432 = vmatprep.subr.mxu0 0.0
      %433 = vmatpush1.msra.mxu0 0.0
      %434 = vmatprep.subr.mxu0 0.0
      %435 = vmatpush1.msra.mxu0 0.0
      %436 = vmatprep.subr.mxu0 0.0
      %437 = vmatpush1.msra.mxu0 0.0
      %438 = vmatprep.subr.mxu0 0.0
      %439 = vmatpush1.msra.mxu0 0.0
      %440 = vmatprep.subr.mxu0 0.0
      %441 = vmatpush1.msra.mxu0 0.0
      %442 = vmatprep.subr.mxu0 0.0
      %443 = vmatpush1.msra.mxu0 0.0
      %444 = vmatprep.subr.mxu0 0.0
      %445 = vmatpush1.msra.mxu0 0.0
      %446 = vmatprep.subr.mxu0 0.0
      %447 = vmatpush1.msra.mxu0 0.0
      %448 = vmatprep.subr.mxu0 0.0
      %449 = vmatpush1.msra.mxu0 0.0
      %450 = vmatprep.subr.mxu0 0.0
      %451 = vmatpush1.msra.mxu0 0.0
      %452 = vmatprep.subr.mxu0 0.0
      %453 = vmatpush1.msra.mxu0 0.0
      %454 = vmatprep.subr.mxu0 0.0
      %455 = vmatpush1.msra.mxu0 0.0
      %456 = vmatprep.subr.mxu0 0.0
      %457 = vmatpush1.msra.mxu0 0.0
      %458 = vmatprep.subr.mxu0 0.0
      %459 = vmatpush1.msra.mxu0 0.0
      %460 = vmatprep.subr.mxu0 0.0
      %461 = vmatpush1.msra.mxu0 0.0
      %462 = vmatprep.subr.mxu0 0.0
      %463 = vmatpush1.msra.mxu0 0.0
      %464 = vmatprep.subr.mxu0 0.0
      %465 = vmatpush1.msra.mxu0 0.0
      %466 = vmatprep.subr.mxu0 0.0
      %467 = vmatpush1.msra.mxu0 0.0
      %468 = vmatprep.subr.mxu0 0.0
      %469 = vmatpush1.msra.mxu0 0.0
      %470 = vmatprep.mubr.f32.mxu0 0.0
      %471 = vmatmul.mubr.f32.gmra.mrb[0].mxu0 %v385
      %v472 = vpop.f32.mrb[0].mxu0
      %v473 = vadd.f32 0.0, %v472
      %v474 = vpop.f32.mrb[0].mxu0
      %v475 = vadd.f32 0.0, %v474
      %476 = vmatprep.mubr.f32.mxu0 0.0
      %477 = vmatmul.mubr.f32.gmra.mrb[0].mxu0 %v387
      %v478 = vpop.f32.mrb[0].mxu0
      %v479 = vadd.f32 0.0, %v478
      %v480 = vpop.f32.mrb[0].mxu0
      %v481 = vadd.f32 0.0, %v480
      %482 = vmatprep.mubr.f32.mxu0 0.0
      %483 = vmatmul.mubr.f32.gmra.mrb[0].mxu0 %v389
      %v484 = vpop.f32.mrb[0].mxu0
      %v485 = vadd.f32 0.0, %v484
      %v486 = vpop.f32.mrb[0].mxu0
      %v487 = vadd.f32 0.0, %v486
      %488 = vmatprep.mubr.f32.mxu0 0.0
      %489 = vmatmul.mubr.f32.gmra.mrb[0].mxu0 %v391
      %v490 = vpop.f32.mrb[0].mxu0
      %v491 = vadd.f32 0.0, %v490
      %v492 = vpop.f32.mrb[0].mxu0
      %v493 = vadd.f32 0.0, %v492
      %494 = vmatprep.mubr.f32.mxu0 0.0
      %495 = vmatmul.mubr.f32.gmra.mrb[0].mxu0 %v393
      %v496 = vpop.f32.mrb[0].mxu0
      %v497 = vadd.f32 0.0, %v496
      %v498 = vpop.f32.mrb[0].mxu0
      %v499 = vadd.f32 0.0, %v498
      %500 = vmatprep.mubr.f32.mxu0 0.0
      %501 = vmatmul.mubr.f32.gmra.mrb[0].mxu0 %v395
      %v502 = vpop.f32.mrb[0].mxu0
      %v503 = vadd.f32 0.0, %v502
      %v504 = vpop.f32.mrb[0].mxu0
      %v505 = vadd.f32 0.0, %v504
      %506 = vmatprep.mubr.f32.mxu0 0.0
      %507 = vmatmul.mubr.f32.gmra.mrb[0].mxu0 %v397
      %v508 = vpop.f32.mrb[0].mxu0
      %v509 = vadd.f32 0.0, %v508
      %v510 = vpop.f32.mrb[0].mxu0
      %v511 = vadd.f32 0.0, %v510
      %512 = vmatprep.mubr.f32.mxu0 0.0
      %513 = vmatmul.mubr.f32.gmra.mrb[0].mxu0 %v399
      %v514 = vpop.f32.mrb[0].mxu0
      %v515 = vadd.f32 0.0, %v514
      %v516 = vpop.f32.mrb[0].mxu0
      %v517 = vadd.f32 0.0, %v516
      %518 = vdwg.mxu0
      %v519 = vsel %vm384, %v255, 0
      %v521 = vsel %vm384, %v256, 0
      %v523 = vsel %vm384, %v257, 0
      %v525 = vsel %vm384, %v258, 0
      %v527 = vsel %vm384, %v259, 0
      %v529 = vsel %vm384, %v260, 0
      %v531 = vsel %vm384, %v261, 0
      %v533 = vsel %vm384, %v262, 0
      %v536 = vsel %vm401, %v358, 0
      %v539 = vsel %vm401, %v359, 0
      %541 = vmatprep.subr.mxu0 %v539
      %542 = vmatpush1.msra.mxu0 %v536
      %543 = vmatprep.subr.mxu0 0.0
      %544 = vmatpush1.msra.mxu0 0.0
      %545 = vmatprep.subr.mxu0 0.0
      %546 = vmatpush1.msra.mxu0 0.0
      %547 = vmatprep.subr.mxu0 0.0
      %548 = vmatpush1.msra.mxu0 0.0
      %549 = vmatprep.subr.mxu0 0.0
      %550 = vmatpush1.msra.mxu0 0.0
      %551 = vmatprep.subr.mxu0 0.0
      %552 = vmatpush1.msra.mxu0 0.0
      %553 = vmatprep.subr.mxu0 0.0
      %554 = vmatpush1.msra.mxu0 0.0
      %555 = vmatprep.subr.mxu0 0.0
      %556 = vmatpush1.msra.mxu0 0.0
      %557 = vmatprep.subr.mxu0 0.0
      %558 = vmatpush1.msra.mxu0 0.0
      %559 = vmatprep.subr.mxu0 0.0
      %560 = vmatpush1.msra.mxu0 0.0
      %561 = vmatprep.subr.mxu0 0.0
      %562 = vmatpush1.msra.mxu0 0.0
      %563 = vmatprep.subr.mxu0 0.0
      %564 = vmatpush1.msra.mxu0 0.0
      %565 = vmatprep.subr.mxu0 0.0
      %566 = vmatpush1.msra.mxu0 0.0
      %567 = vmatprep.subr.mxu0 0.0
      %568 = vmatpush1.msra.mxu0 0.0
      %569 = vmatprep.subr.mxu0 0.0
      %570 = vmatpush1.msra.mxu0 0.0
      %571 = vmatprep.subr.mxu0 0.0
      %572 = vmatpush1.msra.mxu0 0.0
      %573 = vmatprep.subr.mxu0 0.0
      %574 = vmatpush1.msra.mxu0 0.0
      %575 = vmatprep.subr.mxu0 0.0
      %576 = vmatpush1.msra.mxu0 0.0
      %577 = vmatprep.subr.mxu0 0.0
      %578 = vmatpush1.msra.mxu0 0.0
      %579 = vmatprep.subr.mxu0 0.0
      %580 = vmatpush1.msra.mxu0 0.0
      %581 = vmatprep.subr.mxu0 0.0
      %582 = vmatpush1.msra.mxu0 0.0
      %583 = vmatprep.subr.mxu0 0.0
      %584 = vmatpush1.msra.mxu0 0.0
      %585 = vmatprep.subr.mxu0 0.0
      %586 = vmatpush1.msra.mxu0 0.0
      %587 = vmatprep.subr.mxu0 0.0
      %588 = vmatpush1.msra.mxu0 0.0
      %589 = vmatprep.subr.mxu0 0.0
      %590 = vmatpush1.msra.mxu0 0.0
      %591 = vmatprep.subr.mxu0 0.0
      %592 = vmatpush1.msra.mxu0 0.0
      %593 = vmatprep.subr.mxu0 0.0
      %594 = vmatpush1.msra.mxu0 0.0
      %595 = vmatprep.subr.mxu0 0.0
      %596 = vmatpush1.msra.mxu0 0.0
      %597 = vmatprep.subr.mxu0 0.0
      %598 = vmatpush1.msra.mxu0 0.0
      %599 = vmatprep.subr.mxu0 0.0
      %600 = vmatpush1.msra.mxu0 0.0
      %601 = vmatprep.subr.mxu0 0.0
      %602 = vmatpush1.msra.mxu0 0.0
      %603 = vmatprep.subr.mxu0 0.0
      %604 = vmatpush1.msra.mxu0 0.0
      %605 = vmatprep.mubr.f32.mxu0 0.0
      %606 = vmatmul.mubr.f32.gmra.mrb[0].mxu0 %v519
      %v607 = vpop.f32.mrb[0].mxu0
      %v608 = vadd.f32 %v473, %v607
      %v609 = vpop.f32.mrb[0].mxu0
      %v610 = vadd.f32 %v475, %v609
      %611 = vmatprep.mubr.f32.mxu0 0.0
      %612 = vmatmul.mubr.f32.gmra.mrb[0].mxu0 %v521
      %v613 = vpop.f32.mrb[0].mxu0
      %v614 = vadd.f32 %v479, %v613
      %v615 = vpop.f32.mrb[0].mxu0
      %v616 = vadd.f32 %v481, %v615
      %617 = vmatprep.mubr.f32.mxu0 0.0
      %618 = vmatmul.mubr.f32.gmra.mrb[0].mxu0 %v523
      %v619 = vpop.f32.mrb[0].mxu0
      %v620 = vadd.f32 %v485, %v619
      %v621 = vpop.f32.mrb[0].mxu0
      %v622 = vadd.f32 %v487, %v621
      %623 = vmatprep.mubr.f32.mxu0 0.0
      %624 = vmatmul.mubr.f32.gmra.mrb[0].mxu0 %v525
      %v625 = vpop.f32.mrb[0].mxu0
      %v626 = vadd.f32 %v491, %v625
      %v627 = vpop.f32.mrb[0].mxu0
      %v628 = vadd.f32 %v493, %v627
      %629 = vmatprep.mubr.f32.mxu0 0.0
      %630 = vmatmul.mubr.f32.gmra.mrb[0].mxu0 %v527
      %v631 = vpop.f32.mrb[0].mxu0
      %v632 = vadd.f32 %v497, %v631
      %v633 = vpop.f32.mrb[0].mxu0
      %v634 = vadd.f32 %v499, %v633
      %635 = vmatprep.mubr.f32.mxu0 0.0
      %636 = vmatmul.mubr.f32.gmra.mrb[0].mxu0 %v529
      %v637 = vpop.f32.mrb[0].mxu0
      %v638 = vadd.f32 %v503, %v637
      %v639 = vpop.f32.mrb[0].mxu0
      %v640 = vadd.f32 %v505, %v639
      %641 = vmatprep.mubr.f32.mxu0 0.0
      %642 = vmatmul.mubr.f32.gmra.mrb[0].mxu0 %v531
      %v643 = vpop.f32.mrb[0].mxu0
      %v644 = vadd.f32 %v509, %v643
      %v645 = vpop.f32.mrb[0].mxu0
      %v646 = vadd.f32 %v511, %v645
      %647 = vmatprep.mubr.f32.mxu0 0.0
      %648 = vmatmul.mubr.f32.gmra.mrb[0].mxu0 %v533
      %v649 = vpop.f32.mrb[0].mxu0
      %v650 = vadd.f32 %v515, %v649
      %v651 = vpop.f32.mrb[0].mxu0
      %v652 = vadd.f32 %v517, %v651
      %653 = vdwg.mxu0
      %655 = vset.pattern.permute.xlu0 0
      %656 = vperm.xlu0 %655, %v263
      %v657 = vpop.permute.xlu0 %656
      %660 = vset.pattern.permute.xlu0 0
      %661 = vperm.xlu0 %660, %v264
      %v662 = vpop.permute.xlu0 %661
      %665 = vset.pattern.permute.xlu0 0
      %666 = vperm.xlu0 %665, %v265
      %v667 = vpop.permute.xlu0 %666
      %670 = vset.pattern.permute.xlu0 0
      %671 = vperm.xlu0 %670, %v266
      %v672 = vpop.permute.xlu0 %671
      %675 = vset.pattern.permute.xlu0 0
      %676 = vperm.xlu0 %675, %v267
      %v677 = vpop.permute.xlu0 %676
      %680 = vset.pattern.permute.xlu0 0
      %681 = vperm.xlu0 %680, %v268
      %v682 = vpop.permute.xlu0 %681
      %685 = vset.pattern.permute.xlu0 0
      %686 = vperm.xlu0 %685, %v269
      %v687 = vpop.permute.xlu0 %686
      %690 = vset.pattern.permute.xlu0 0
      %691 = vperm.xlu0 %690, %v270
      %v692 = vpop.permute.xlu0 %691
      %v694 = vadd.f32 %v608, %v657
      %v695 = vadd.f32 %v610, %v657
      %v696 = vadd.f32 %v614, %v662
      %v697 = vadd.f32 %v616, %v662
      %v698 = vadd.f32 %v620, %v667
      %v699 = vadd.f32 %v622, %v667
      %v700 = vadd.f32 %v626, %v672
      %v701 = vadd.f32 %v628, %v672
      %v702 = vadd.f32 %v632, %v677
      %v703 = vadd.f32 %v634, %v677
      %v704 = vadd.f32 %v638, %v682
      %v705 = vadd.f32 %v640, %v682
      %v706 = vadd.f32 %v644, %v687
      %v707 = vadd.f32 %v646, %v687
      %v708 = vadd.f32 %v650, %v692
      %v709 = vadd.f32 %v652, %v692
      %v710 = vmax.f32 %v694, 0.0
      %v711 = vmax.f32 %v695, 0.0
      %v712 = vmax.f32 %v696, 0.0
      %v713 = vmax.f32 %v697, 0.0
      %v714 = vmax.f32 %v698, 0.0
      %v715 = vmax.f32 %v699, 0.0
      %v716 = vmax.f32 %v700, 0.0
      %v717 = vmax.f32 %v701, 0.0
      %v718 = vmax.f32 %v702, 0.0
      %v719 = vmax.f32 %v703, 0.0
      %v720 = vmax.f32 %v704, 0.0
      %v721 = vmax.f32 %v705, 0.0
      %v722 = vmax.f32 %v706, 0.0
      %v723 = vmax.f32 %v707, 0.0
      %v724 = vmax.f32 %v708, 0.0
      %v725 = vmax.f32 %v709, 0.0
      %v726 = vld [vmem:[%s4] sm:$0x1]
      %v727 = vld [vmem:[#allocation2] sm:$0x1]
      %728 = vrot.lane.b32.xlu0 %v710, 16
      %v729 = vpop.permute.xlu0 %728
      %730 = vrot.lane.b32.xlu0 %v712, 16
      %v731 = vpop.permute.xlu0 %730
      %732 = vrot.lane.b32.xlu0 %v714, 16
      %v733 = vpop.permute.xlu0 %732
      %734 = vrot.lane.b32.xlu0 %v716, 16
      %v735 = vpop.permute.xlu0 %734
      %736 = vrot.lane.b32.xlu0 %v718, 16
      %v737 = vpop.permute.xlu0 %736
      %738 = vrot.lane.b32.xlu0 %v720, 16
      %v739 = vpop.permute.xlu0 %738
      %740 = vrot.lane.b32.xlu0 %v722, 16
      %v741 = vpop.permute.xlu0 %740
      %742 = vrot.lane.b32.xlu0 %v724, 16
      %v743 = vpop.permute.xlu0 %742
      %744 = vrot.lane.b32.xlu0 %v711, 16
      %v745 = vpop.permute.xlu0 %744
      %746 = vrot.lane.b32.xlu0 %v713, 16
      %v747 = vpop.permute.xlu0 %746
      %748 = vrot.lane.b32.xlu0 %v715, 16
      %v749 = vpop.permute.xlu0 %748
      %750 = vrot.lane.b32.xlu0 %v717, 16
      %v751 = vpop.permute.xlu0 %750
      %752 = vrot.lane.b32.xlu0 %v719, 16
      %v753 = vpop.permute.xlu0 %752
      %754 = vrot.lane.b32.xlu0 %v721, 16
      %v755 = vpop.permute.xlu0 %754
      %756 = vrot.lane.b32.xlu0 %v723, 16
      %v757 = vpop.permute.xlu0 %756
      %758 = vrot.lane.b32.xlu0 %v725, 16
      %v759 = vpop.permute.xlu0 %758
      %v760 = vsel %vm280, %v729, %v745
      %v761 = vsel %vm280, %v731, %v747
      %v762 = vsel %vm280, %v733, %v749
      %v763 = vsel %vm280, %v735, %v751
      %v764 = vsel %vm280, %v737, %v753
      %v765 = vsel %vm280, %v739, %v755
      %v766 = vsel %vm280, %v741, %v757
      %v767 = vsel %vm280, %v743, %v759
      %v768 = vsel %vm280, %v745, %v729
      %v769 = vsel %vm280, %v747, %v731
      %v770 = vsel %vm280, %v749, %v733
      %v771 = vsel %vm280, %v751, %v735
      %v772 = vsel %vm280, %v753, %v737
      %v773 = vsel %vm280, %v755, %v739
      %v774 = vsel %vm280, %v757, %v741
      %v775 = vsel %vm280, %v759, %v743
      %v776 = vmul.f32 %v768, %v286
      %v777 = vmul.f32 %v760, %v290
      %v778 = vmul.f32 %v769, %v286
      %v779 = vmul.f32 %v761, %v290
      %v780 = vmul.f32 %v770, %v286
      %v781 = vmul.f32 %v762, %v290
      %v782 = vmul.f32 %v771, %v286
      %v783 = vmul.f32 %v763, %v290
      %v784 = vmul.f32 %v772, %v286
      %v785 = vmul.f32 %v764, %v290
      %v786 = vmul.f32 %v773, %v286
      %v787 = vmul.f32 %v765, %v290
      %v788 = vmul.f32 %v774, %v286
      %v789 = vmul.f32 %v766, %v290
      %v790 = vmul.f32 %v775, %v286
      %v791 = vmul.f32 %v767, %v290
      %792 = vrot.lane.b32.xlu0 %v710, 112
      %v793 = vpop.permute.xlu0 %792
      %794 = vrot.lane.b32.xlu0 %v712, 112
      %v795 = vpop.permute.xlu0 %794
      %796 = vrot.lane.b32.xlu0 %v714, 112
      %v797 = vpop.permute.xlu0 %796
      %798 = vrot.lane.b32.xlu0 %v716, 112
      %v799 = vpop.permute.xlu0 %798
      %800 = vrot.lane.b32.xlu0 %v718, 112
      %v801 = vpop.permute.xlu0 %800
      %802 = vrot.lane.b32.xlu0 %v720, 112
      %v803 = vpop.permute.xlu0 %802
      %804 = vrot.lane.b32.xlu0 %v722, 112
      %v805 = vpop.permute.xlu0 %804
      %806 = vrot.lane.b32.xlu0 %v724, 112
      %v807 = vpop.permute.xlu0 %806
      %808 = vrot.lane.b32.xlu0 %v711, 112
      %v809 = vpop.permute.xlu0 %808
      %810 = vrot.lane.b32.xlu0 %v713, 112
      %v811 = vpop.permute.xlu0 %810
      %812 = vrot.lane.b32.xlu0 %v715, 112
      %v813 = vpop.permute.xlu0 %812
      %814 = vrot.lane.b32.xlu0 %v717, 112
      %v815 = vpop.permute.xlu0 %814
      %816 = vrot.lane.b32.xlu0 %v719, 112
      %v817 = vpop.permute.xlu0 %816
      %818 = vrot.lane.b32.xlu0 %v721, 112
      %v819 = vpop.permute.xlu0 %818
      %820 = vrot.lane.b32.xlu0 %v723, 112
      %v821 = vpop.permute.xlu0 %820
      %822 = vrot.lane.b32.xlu0 %v725, 112
      %v823 = vpop.permute.xlu0 %822
      %v824 = vsel %vm297, %v793, %v809
      %v825 = vsel %vm297, %v795, %v811
      %v826 = vsel %vm297, %v797, %v813
      %v827 = vsel %vm297, %v799, %v815
      %v828 = vsel %vm297, %v801, %v817
      %v829 = vsel %vm297, %v803, %v819
      %v830 = vsel %vm297, %v805, %v821
      %v831 = vsel %vm297, %v807, %v823
      %v832 = vsel %vm297, %v809, %v793
      %v833 = vsel %vm297, %v811, %v795
      %v834 = vsel %vm297, %v813, %v797
      %v835 = vsel %vm297, %v815, %v799
      %v836 = vsel %vm297, %v817, %v801
      %v837 = vsel %vm297, %v819, %v803
      %v838 = vsel %vm297, %v821, %v805
      %v839 = vsel %vm297, %v823, %v807
      %v840 = vmul.f32 %v824, %v303
      %v841 = vmul.f32 %v832, %v307
      %v842 = vmul.f32 %v825, %v303
      %v843 = vmul.f32 %v833, %v307
      %v844 = vmul.f32 %v826, %v303
      %v845 = vmul.f32 %v834, %v307
      %v846 = vmul.f32 %v827, %v303
      %v847 = vmul.f32 %v835, %v307
      %v848 = vmul.f32 %v828, %v303
      %v849 = vmul.f32 %v836, %v307
      %v850 = vmul.f32 %v829, %v303
      %v851 = vmul.f32 %v837, %v307
      %v852 = vmul.f32 %v830, %v303
      %v853 = vmul.f32 %v838, %v307
      %v854 = vmul.f32 %v831, %v303
      %v855 = vmul.f32 %v839, %v307
      %v856 = vadd.f32 %v776, %v840
      %v857 = vadd.f32 %v777, %v841
      %v858 = vadd.f32 %v778, %v842
      %v859 = vadd.f32 %v779, %v843
      %v860 = vadd.f32 %v780, %v844
      %v861 = vadd.f32 %v781, %v845
      %v862 = vadd.f32 %v782, %v846
      %v863 = vadd.f32 %v783, %v847
      %v864 = vadd.f32 %v784, %v848
      %v865 = vadd.f32 %v785, %v849
      %v866 = vadd.f32 %v786, %v850
      %v867 = vadd.f32 %v787, %v851
      %v868 = vadd.f32 %v788, %v852
      %v869 = vadd.f32 %v789, %v853
      %v870 = vadd.f32 %v790, %v854
      %v871 = vadd.f32 %v791, %v855
      %872 = vrot.lane.b32.xlu0 %v710, 1
      %v873 = vpop.permute.xlu0 %872
      %874 = vrot.lane.b32.xlu0 %v712, 1
      %v875 = vpop.permute.xlu0 %874
      %876 = vrot.lane.b32.xlu0 %v714, 1
      %v877 = vpop.permute.xlu0 %876
      %878 = vrot.lane.b32.xlu0 %v716, 1
      %v879 = vpop.permute.xlu0 %878
      %880 = vrot.lane.b32.xlu0 %v718, 1
      %v881 = vpop.permute.xlu0 %880
      %882 = vrot.lane.b32.xlu0 %v720, 1
      %v883 = vpop.permute.xlu0 %882
      %884 = vrot.lane.b32.xlu0 %v722, 1
      %v885 = vpop.permute.xlu0 %884
      %886 = vrot.lane.b32.xlu0 %v724, 1
      %v887 = vpop.permute.xlu0 %886
      %888 = vrot.lane.b32.xlu0 %v711, 1
      %v889 = vpop.permute.xlu0 %888
      %890 = vrot.lane.b32.xlu0 %v713, 1
      %v891 = vpop.permute.xlu0 %890
      %892 = vrot.lane.b32.xlu0 %v715, 1
      %v893 = vpop.permute.xlu0 %892
      %894 = vrot.lane.b32.xlu0 %v717, 1
      %v895 = vpop.permute.xlu0 %894
      %896 = vrot.lane.b32.xlu0 %v719, 1
      %v897 = vpop.permute.xlu0 %896
      %898 = vrot.lane.b32.xlu0 %v721, 1
      %v899 = vpop.permute.xlu0 %898
      %900 = vrot.lane.b32.xlu0 %v723, 1
      %v901 = vpop.permute.xlu0 %900
      %902 = vrot.lane.b32.xlu0 %v725, 1
      %v903 = vpop.permute.xlu0 %902
      %v904 = vsel %vm316, %v873, %v889
      %v905 = vsel %vm316, %v875, %v891
      %v906 = vsel %vm316, %v877, %v893
      %v907 = vsel %vm316, %v879, %v895
      %v908 = vsel %vm316, %v881, %v897
      %v909 = vsel %vm316, %v883, %v899
      %v910 = vsel %vm316, %v885, %v901
      %v911 = vsel %vm316, %v887, %v903
      %v912 = vsel %vm316, %v889, %v873
      %v913 = vsel %vm316, %v891, %v875
      %v914 = vsel %vm316, %v893, %v877
      %v915 = vsel %vm316, %v895, %v879
      %v916 = vsel %vm316, %v897, %v881
      %v917 = vsel %vm316, %v899, %v883
      %v918 = vsel %vm316, %v901, %v885
      %v919 = vsel %vm316, %v903, %v887
      %v920 = vmul.f32 %v912, %v322
      %v921 = vmul.f32 %v904, %v326
      %v922 = vmul.f32 %v913, %v322
      %v923 = vmul.f32 %v905, %v326
      %v924 = vmul.f32 %v914, %v322
      %v925 = vmul.f32 %v906, %v326
      %v926 = vmul.f32 %v915, %v322
      %v927 = vmul.f32 %v907, %v326
      %v928 = vmul.f32 %v916, %v322
      %v929 = vmul.f32 %v908, %v326
      %v930 = vmul.f32 %v917, %v322
      %v931 = vmul.f32 %v909, %v326
      %v932 = vmul.f32 %v918, %v322
      %v933 = vmul.f32 %v910, %v326
      %v934 = vmul.f32 %v919, %v322
      %v935 = vmul.f32 %v911, %v326
      %v936 = vadd.f32 %v856, %v920
      %v937 = vadd.f32 %v857, %v921
      %v938 = vadd.f32 %v858, %v922
      %v939 = vadd.f32 %v859, %v923
      %v940 = vadd.f32 %v860, %v924
      %v941 = vadd.f32 %v861, %v925
      %v942 = vadd.f32 %v862, %v926
      %v943 = vadd.f32 %v863, %v927
      %v944 = vadd.f32 %v864, %v928
      %v945 = vadd.f32 %v865, %v929
      %v946 = vadd.f32 %v866, %v930
      %v947 = vadd.f32 %v867, %v931
      %v948 = vadd.f32 %v868, %v932
      %v949 = vadd.f32 %v869, %v933
      %v950 = vadd.f32 %v870, %v934
      %v951 = vadd.f32 %v871, %v935
      %952 = vrot.lane.b32.xlu0 %v710, 127
      %v953 = vpop.permute.xlu0 %952
      %954 = vrot.lane.b32.xlu0 %v712, 127
      %v955 = vpop.permute.xlu0 %954
      %956 = vrot.lane.b32.xlu0 %v714, 127
      %v957 = vpop.permute.xlu0 %956
      %958 = vrot.lane.b32.xlu0 %v716, 127
      %v959 = vpop.permute.xlu0 %958
      %960 = vrot.lane.b32.xlu0 %v718, 127
      %v961 = vpop.permute.xlu0 %960
      %962 = vrot.lane.b32.xlu0 %v720, 127
      %v963 = vpop.permute.xlu0 %962
      %964 = vrot.lane.b32.xlu0 %v722, 127
      %v965 = vpop.permute.xlu0 %964
      %966 = vrot.lane.b32.xlu0 %v724, 127
      %v967 = vpop.permute.xlu0 %966
      %968 = vrot.lane.b32.xlu0 %v711, 127
      %v969 = vpop.permute.xlu0 %968
      %970 = vrot.lane.b32.xlu0 %v713, 127
      %v971 = vpop.permute.xlu0 %970
      %972 = vrot.lane.b32.xlu0 %v715, 127
      %v973 = vpop.permute.xlu0 %972
      %974 = vrot.lane.b32.xlu0 %v717, 127
      %v975 = vpop.permute.xlu0 %974
      %976 = vrot.lane.b32.xlu0 %v719, 127
      %v977 = vpop.permute.xlu0 %976
      %978 = vrot.lane.b32.xlu0 %v721, 127
      %v979 = vpop.permute.xlu0 %978
      %980 = vrot.lane.b32.xlu0 %v723, 127
      %v981 = vpop.permute.xlu0 %980
      %982 = vrot.lane.b32.xlu0 %v725, 127
      %v983 = vpop.permute.xlu0 %982
      %v984 = vsel %vm335, %v953, %v969
      %v985 = vsel %vm335, %v955, %v971
      %v986 = vsel %vm335, %v957, %v973
      %v987 = vsel %vm335, %v959, %v975
      %v988 = vsel %vm335, %v961, %v977
      %v989 = vsel %vm335, %v963, %v979
      %v990 = vsel %vm335, %v965, %v981
      %v991 = vsel %vm335, %v967, %v983
      %v992 = vsel %vm335, %v969, %v953
      %v993 = vsel %vm335, %v971, %v955
      %v994 = vsel %vm335, %v973, %v957
      %v995 = vsel %vm335, %v975, %v959
      %v996 = vsel %vm335, %v977, %v961
      %v997 = vsel %vm335, %v979, %v963
      %v998 = vsel %vm335, %v981, %v965
      %v999 = vsel %vm335, %v983, %v967
      %v1000 = vmul.f32 %v984, %v341
      %v1001 = vmul.f32 %v992, %v345
      %v1002 = vmul.f32 %v985, %v341
      %v1003 = vmul.f32 %v993, %v345
      %v1004 = vmul.f32 %v986, %v341
      %v1005 = vmul.f32 %v994, %v345
      %v1006 = vmul.f32 %v987, %v341
      %v1007 = vmul.f32 %v995, %v345
      %v1008 = vmul.f32 %v988, %v341
      %v1009 = vmul.f32 %v996, %v345
      %v1010 = vmul.f32 %v989, %v341
      %v1011 = vmul.f32 %v997, %v345
      %v1012 = vmul.f32 %v990, %v341
      %v1013 = vmul.f32 %v998, %v345
      %v1014 = vmul.f32 %v991, %v341
      %v1015 = vmul.f32 %v999, %v345
      %v1016 = vadd.f32 %v936, %v1000
      %v1017 = vadd.f32 %v937, %v1001
      %v1018 = vadd.f32 %v938, %v1002
      %v1019 = vadd.f32 %v939, %v1003
      %v1020 = vadd.f32 %v940, %v1004
      %v1021 = vadd.f32 %v941, %v1005
      %v1022 = vadd.f32 %v942, %v1006
      %v1023 = vadd.f32 %v943, %v1007
      %v1024 = vadd.f32 %v944, %v1008
      %v1025 = vadd.f32 %v945, %v1009
      %v1026 = vadd.f32 %v946, %v1010
      %v1027 = vadd.f32 %v947, %v1011
      %v1028 = vadd.f32 %v948, %v1012
      %v1029 = vadd.f32 %v949, %v1013
      %v1030 = vadd.f32 %v950, %v1014
      %v1031 = vadd.f32 %v951, %v1015
      %v1032 = vmul.f32 %v1016, %v353
      %v1033 = vmul.f32 %v1017, %v357
      %v1034 = vmul.f32 %v1018, %v353
      %v1035 = vmul.f32 %v1019, %v357
      %v1036 = vmul.f32 %v1020, %v353
      %v1037 = vmul.f32 %v1021, %v357
      %v1038 = vmul.f32 %v1022, %v353
      %v1039 = vmul.f32 %v1023, %v357
      %v1040 = vmul.f32 %v1024, %v353
      %v1041 = vmul.f32 %v1025, %v357
      %v1042 = vmul.f32 %v1026, %v353
      %v1043 = vmul.f32 %v1027, %v357
      %v1044 = vmul.f32 %v1028, %v353
      %v1045 = vmul.f32 %v1029, %v357
      %v1046 = vmul.f32 %v1030, %v353
      %v1047 = vmul.f32 %v1031, %v357
      %1049 = vset.pattern.permute.xlu0 0
      %1050 = vperm.xlu0 %1049, %v727
      %v1051 = vpop.permute.xlu0 %1050
      %v1053 = vlaneseq
      %v1054 = vshrl.u32 %v1053, 7
      %v1055 = vsub.s32 0, %v1054
      %v1056 = vrot.slane %v1051, %v1055
      %1057 = vmatprep.subr.mxu0 %v1033
      %1058 = vmatpush1.msra.mxu0 %v1032
      %1059 = vmatprep.subr.mxu0 %v1035
      %1060 = vmatpush1.msra.mxu0 %v1034
      %1061 = vmatprep.subr.mxu0 %v1037
      %1062 = vmatpush1.msra.mxu0 %v1036
      %1063 = vmatprep.subr.mxu0 %v1039
      %1064 = vmatpush1.msra.mxu0 %v1038
      %1065 = vmatprep.subr.mxu0 %v1041
      %1066 = vmatpush1.msra.mxu0 %v1040
      %1067 = vmatprep.subr.mxu0 %v1043
      %1068 = vmatpush1.msra.mxu0 %v1042
      %1069 = vmatprep.subr.mxu0 %v1045
      %1070 = vmatpush1.msra.mxu0 %v1044
      %1071 = vmatprep.subr.mxu0 %v1047
      %1072 = vmatpush1.msra.mxu0 %v1046
      %1073 = vmatprep.subr.mxu0 %v711
      %1074 = vmatpush1.msra.mxu0 %v710
      %1075 = vmatprep.subr.mxu0 %v713
      %1076 = vmatpush1.msra.mxu0 %v712
      %1077 = vmatprep.subr.mxu0 %v715
      %1078 = vmatpush1.msra.mxu0 %v714
      %1079 = vmatprep.subr.mxu0 %v717
      %1080 = vmatpush1.msra.mxu0 %v716
      %1081 = vmatprep.subr.mxu0 %v719
      %1082 = vmatpush1.msra.mxu0 %v718
      %1083 = vmatprep.subr.mxu0 %v721
      %1084 = vmatpush1.msra.mxu0 %v720
      %1085 = vmatprep.subr.mxu0 %v723
      %1086 = vmatpush1.msra.mxu0 %v722
      %1087 = vmatprep.subr.mxu0 %v725
      %1088 = vmatpush1.msra.mxu0 %v724
      %1089 = vmatprep.subr.mxu0 0.0
      %1090 = vmatpush1.msra.mxu0 0.0
      %1091 = vmatprep.subr.mxu0 0.0
      %1092 = vmatpush1.msra.mxu0 0.0
      %1093 = vmatprep.subr.mxu0 0.0
      %1094 = vmatpush1.msra.mxu0 0.0
      %1095 = vmatprep.subr.mxu0 0.0
      %1096 = vmatpush1.msra.mxu0 0.0
      %1097 = vmatprep.subr.mxu0 0.0
      %1098 = vmatpush1.msra.mxu0 0.0
      %1099 = vmatprep.subr.mxu0 0.0
      %1100 = vmatpush1.msra.mxu0 0.0
      %1101 = vmatprep.subr.mxu0 0.0
      %1102 = vmatpush1.msra.mxu0 0.0
      %1103 = vmatprep.subr.mxu0 0.0
      %1104 = vmatpush1.msra.mxu0 0.0
      %1105 = vmatprep.subr.mxu0 0.0
      %1106 = vmatpush1.msra.mxu0 0.0
      %1107 = vmatprep.subr.mxu0 0.0
      %1108 = vmatpush1.msra.mxu0 0.0
      %1109 = vmatprep.subr.mxu0 0.0
      %1110 = vmatpush1.msra.mxu0 0.0
      %1111 = vmatprep.subr.mxu0 0.0
      %1112 = vmatpush1.msra.mxu0 0.0
      %1113 = vmatprep.subr.mxu0 0.0
      %1114 = vmatpush1.msra.mxu0 0.0
      %1115 = vmatprep.subr.mxu0 0.0
      %1116 = vmatpush1.msra.mxu0 0.0
      %1117 = vmatprep.subr.mxu0 0.0
      %1118 = vmatpush1.msra.mxu0 0.0
      %1119 = vmatprep.subr.mxu0 0.0
      %1120 = vmatpush1.msra.mxu0 0.0
      %1121 = vmatprep.mubr.f32.mxu0 0.0
      %1122 = vmatmul.mubr.f32.gmra.mrb[0].mxu0 %v726
      %v1123 = vpop.f32.mrb[0].mxu0
      %v1124 = vadd.f32 %v1056, %v1123
      %v1125 = vpop.f32.mrb[0].mxu0
      %v1126 = vadd.f32 %v1056, %v1125
      %1127 = vdwg.mxu0
      %v1128 = vxor.u32 %v1124, 2147483648
      %v1129 = vxor.u32 %v1126, 2147483648
      %v1130 = vmul.f32 %v1128, 1.442695
      %v1131 = vpow.pop %v1130
      %v1132 = vmul.f32 %v1129, 1.442695
      %v1133 = vpow.pop %v1132
      %v1134 = vadd.f32 %v1131, 1.0
      %v1135 = vadd.f32 %v1133, 1.0
      %v1136 = vrcp.pop %v1134
      %v1137 = vmul.f32 1.0, %v1136
      %v1138 = vrcp.pop %v1135
      %v1139 = vmul.f32 1.0, %v1138
      %v1142 = vcombine.low %v1137, %v1139
      %v1144 = vunpack.c.l.s4 1966171168
      %v1145 = vunpack.c.0.s8 %v1144
      %v1146 = vlaneseq
      %v1147 = vshrl.u32 %v1146, 7
      %v1148 = vsub.s32 %v1145, %v1147
      %v1149 = vrot.slane %v1142, %v1148
      %v1151 = vunpack.c.l.s4 1966171168
      %v1152 = vunpack.c.0.s8 %v1151
      %v1153 = vlaneseq
      %v1154 = vshrl.u32 %v1153, 7
      %v1155 = vsub.s32 %v1152, %v1154
      %v1156 = vrot.slane %v1149, %v1155
      %v1158 = vlaneseq
      %vm1159 = vcmp.ge.s32.totalorder %v1158, 0
      %vm1160 = vcmp.lt.s32.totalorder %v1158, 256
      %vm1161 = vmand %vm1159, %vm1160
      %1162 = vst.msk [vmem:[%s251] sm:$0x3] %vm1161, %v1156
      %p1163 = scmp.lt.s32.totalorder %s19, 1
      %s1164 = scalar_select %p1163, %s19, 1
      %s1165 = smul.addr %s1164, 2
      %s1166 = scalar_lea.vmem %s6, %s1165
      // Predicated region
      $region45: #{graphsage_congestion_forward.1} parent=43 // pred_check
        %p1167 = pneg %p168
      $region46: #{graphsage_congestion_forward.1} parent=43 // pred_check_branch
        %1169 = sbr.rel (%p1167) target = $region48
      $region47: #{graphsage_congestion_forward.1} parent=43 // pred_region
        _
      $region48: #{graphsage_congestion_forward.1} parent=43 // pred_fallthru
        _
    $region44: #{graphsage_congestion_forward.1} parent=5 // pred_fallthru
      _
    %p1170 = scmp.le.s32.totalorder 2, %s14
    // Predicated region
    $region49: #{graphsage_congestion_forward.1} parent=5 // pred_check
      %p1171 = pneg %p1170
    $region50: #{graphsage_congestion_forward.1} parent=5 // pred_check_branch
      %1173 = sbr.rel (%p1171) target = $region52
    $region51: #{graphsage_congestion_forward.1} parent=5 // pred_region
      %s1174 = ssub.s32 %s14, 2
      // Predicated region
      $region53: #{graphsage_congestion_forward.1} parent=51 // pred_check
        %p1175 = pneg %p174
      $region54: #{graphsage_congestion_forward.1} parent=51 // pred_check_branch
        %1177 = sbr.rel (%p1175) target = $region56
      $region55: #{graphsage_congestion_forward.1} parent=51 // pred_region
        %p1178 = scmp.lt.s32.totalorder %s20, 1
        %s1179 = scalar_select %p1178, %s20, 1
        %s1180 = smul.addr %s1179, 2
        %s1181 = scalar_lea.vmem %s6, %s1180
      $region56: #{graphsage_congestion_forward.1} parent=51 // pred_fallthru
        _
    $region52: #{graphsage_congestion_forward.1} parent=5 // pred_fallthru
      _
  $region6: #{graphsage_congestion_forward.1} parent=0 // loop_footer
    %s18 = sadd.s32 1, %s14
  $region7: #{graphsage_congestion_forward.1} parent=0 // loop_footer_branch
    %13 = sbr.rel target = $region3
  $region8: #{graphsage_congestion_forward.1} parent=0 // loop_exit
    _

</llo_original>
